<compile_context>
chip_gen: v6e
topology: v6e:2x2x1
jax: 0.10.0
libtpu: 0.0.40
codegen_flags: <defaults>
</compile_context>

<pallas_src>
import jax
import jax.numpy as jnp
from jax import lax
from jax.experimental import pallas as pl
from jax.experimental.pallas import tpu as pltpu


# ---------------------------------------------------------------------------
# Kernel 1: fused Q / K projection over flattened rows.
#   x:   (tm, Hp) bf16        wqT/wkT: (Hp, Op) bf16 (pre-transposed, resident)
#   bq/bk: (1, Op) f32         outputs q, k: (tm, Op) bf16
# ---------------------------------------------------------------------------
def proj_kernel(x_ref, wqT_ref, bq_ref, wkT_ref, bk_ref, q_ref, k_ref):
    x = x_ref[...]
    q = jnp.dot(x, wqT_ref[...], preferred_element_type=jnp.float32) + bq_ref[...]
    k = jnp.dot(x, wkT_ref[...], preferred_element_type=jnp.float32) + bk_ref[...]
    q_ref[...] = q.astype(q_ref.dtype)
    k_ref[...] = k.astype(k_ref.dtype)


# ---------------------------------------------------------------------------
# Kernel 2: score tile = Q_tile @ K_tile^T (standard attention contraction).
#   q: (tq, Op) bf16   k: (tk, Op) bf16   o: (tq, tk) f32
# ---------------------------------------------------------------------------
def score_kernel(q_ref, k_ref, o_ref):
    s = lax.dot_general(q_ref[...], k_ref[...],
                        dimension_numbers=(((1,), (1,)), ((), ())),
                        preferred_element_type=jnp.float32)
    o_ref[...] = s.astype(o_ref.dtype)


def _round_up(n, m):
    return (n + m - 1) // m * m


def _pick_tile(n, preferred):
    for cand in (preferred, 256, 128):
        if n >= cand and n % cand == 0:
            return cand
    return n  # small / odd extent: use the full dimension (legal block shape)


def _vmem_capacity_bytes():
    try:
        cap = getattr(pltpu.get_tpu_info(), "vmem_capacity_bytes", None)
        if cap:
            return int(cap)
    except Exception:
        pass
    return 64 * 1024 * 1024  # conservative default (v7x per-TC)


def lnetwork_forward(x, wq, bq, wk, bk):
    """x: (B, S, H); wq/wk: (O, H) torch nn.Linear layout; bq/bk: (O,).
    Returns score (B, S, S) float32 == (x@wq.T+bq) @ (x@wk.T+bk)^T per batch."""
    B, S, H = x.shape
    O = wq.shape[0]
    Hp = _round_up(H, 128)
    Op = _round_up(O, 128)

    cap = _vmem_capacity_bytes()
    headroom = 8 * 1024 * 1024
    cap_limit = cap - headroom
    pref = 512 if cap >= (96 << 20) else 256  # 512 on v5e/v6e (128 MiB), 256 on v7x

    # ---- stage 1: project Q and K once (x read once, weights resident) ----
    R = B * S
    tm = _pick_tile(R, pref)

    x2 = x.reshape(R, H).astype(jnp.bfloat16)
    x2 = jnp.pad(x2, ((0, 0), (0, Hp - H)))
    wqT = jnp.pad(wq.T.astype(jnp.bfloat16), ((0, Hp - H), (0, Op - O)))
    wkT = jnp.pad(wk.T.astype(jnp.bfloat16), ((0, Hp - H), (0, Op - O)))
    bq2 = jnp.pad(bq.astype(jnp.float32), (0, Op - O)).reshape(1, Op)
    bk2 = jnp.pad(bk.astype(jnp.float32), (0, Op - O)).reshape(1, Op)

    proj_est = (2 * tm * Hp * 2          # x tile (double-buffered, bf16)
                + 2 * 2 * Hp * Op * 2    # wqT + wkT (double-buffered, bf16)
                + 2 * 2 * Op * 4         # biases
                + 2 * 2 * tm * Op * 2)   # q / k output tiles (double-buffered)
    proj_limit = int(min(max(32 * 1024 * 1024, 2 * proj_est), cap_limit))

    q2, k2 = pl.pallas_call(
        proj_kernel,
        out_shape=(jax.ShapeDtypeStruct((R, Op), jnp.bfloat16),
                   jax.ShapeDtypeStruct((R, Op), jnp.bfloat16)),
        grid_spec=pltpu.PrefetchScalarGridSpec(
            num_scalar_prefetch=0,
            grid=(R // tm,),
            in_specs=[
                pl.BlockSpec((tm, Hp), lambda i: (i, 0)),
                pl.BlockSpec((Hp, Op), lambda i: (0, 0)),  # resident weights
                pl.BlockSpec((1, Op), lambda i: (0, 0)),
                pl.BlockSpec((Hp, Op), lambda i: (0, 0)),
                pl.BlockSpec((1, Op), lambda i: (0, 0)),
            ],
            out_specs=(pl.BlockSpec((tm, Op), lambda i: (i, 0)),
                       pl.BlockSpec((tm, Op), lambda i: (i, 0))),
        ),
        compiler_params=pltpu.CompilerParams(
            dimension_semantics=("parallel",),
            vmem_limit_bytes=proj_limit,
        ),
    )(x2, wqT, bq2, wkT, bk2)

    q3 = q2.reshape(B, S, Op)
    k3 = k2.reshape(B, S, Op)

    # ---- stage 2: pure q @ k^T over (B*nq, nk) grid ----
    tq = _pick_tile(S, pref)
    tk = _pick_tile(S, pref)
    nq = S // tq
    nk = S // tk

    score_est = 2 * tq * Op * 2 + 2 * tk * Op * 2 + 2 * tq * tk * 4
    score_limit = int(min(max(32 * 1024 * 1024, 2 * score_est), cap_limit))

    return pl.pallas_call(
        score_kernel,
        out_shape=jax.ShapeDtypeStruct((B, S, S), jnp.float32),
        grid_spec=pltpu.PrefetchScalarGridSpec(
            num_scalar_prefetch=0,
            # fold (B, qi) into one leading parallel axis for megacore balance
            grid=(B * nq, nk),
            in_specs=[
                pl.BlockSpec((pl.Squeezed(), tq, Op),
                             lambda i, j: (i // nq, i % nq, 0)),
                pl.BlockSpec((pl.Squeezed(), tk, Op),
                             lambda i, j: (i // nq, j, 0)),
            ],
            out_specs=pl.BlockSpec((pl.Squeezed(), tq, tk),
                                   lambda i, j: (i // nq, i % nq, j)),
        ),
        compiler_params=pltpu.CompilerParams(
            dimension_semantics=("parallel", "parallel"),
            vmem_limit_bytes=score_limit,
        ),
    )(q3, k3)


if __name__ == "__main__":
    # small shapes implied by the forward: (batch, seq, hidden) -> (batch, seq, seq)
    B, S, H, O = 2, 8, 32, 32

    key = jax.random.PRNGKey(0)
    kx, kwq, kbq, kwk, kbk = jax.random.split(key, 5)

    x = jax.random.normal(kx, (B, S, H), dtype=jnp.float32)
    # torch nn.Linear-style parameter shapes: weight (out, in), bias (out,)
    wq = jax.random.normal(kwq, (O, H), dtype=jnp.float32) * 0.02
    bq = jax.random.normal(kbq, (O,), dtype=jnp.float32) * 0.02
    wk = jax.random.normal(kwk, (O, H), dtype=jnp.float32) * 0.02
    bk = jax.random.normal(kbk, (O,), dtype=jnp.float32) * 0.02

    out = lnetwork_forward(x, wq, bq, wk, bk)
    jax.block_until_ready(out)

    # pure-JAX f32 reference for semantics check (bf16 MXU path -> looser tol)
    q_ref = x @ wq.T + bq
    k_ref = x @ wk.T + bk
    ref = jnp.einsum("bsd,btd->bst", q_ref, k_ref)
    assert out.shape == (B, S, S)
    assert jnp.allclose(out, ref, atol=2e-2, rtol=2e-2), \
        float(jnp.max(jnp.abs(out - ref)))

    print("KERNEL_OK")
</pallas_src>

<mosaic_0001>
module attributes {stable_mosaic.version = 11 : i64} {
  func.func @proj_kernel(%arg0: i32, %arg1: memref<16x128xbf16, #tpu.memory_space<vmem>>, %arg2: memref<128x128xbf16, #tpu.memory_space<vmem>>, %arg3: memref<1x128xf32, #tpu.memory_space<vmem>>, %arg4: memref<128x128xbf16, #tpu.memory_space<vmem>>, %arg5: memref<1x128xf32, #tpu.memory_space<vmem>>, %arg6: memref<16x128xbf16, #tpu.memory_space<vmem>>, %arg7: memref<16x128xbf16, #tpu.memory_space<vmem>>) attributes {dimension_semantics = [#tpu.dimension_semantics<parallel>], iteration_bounds = array<i64: 1>, scalar_prefetch = 0 : i64, scratch_operands = 0 : i64, tpu.core_type = #tpu.core_type<tc>, window_params = [{transform_indices = @transform_0, window_bounds = array<i64: 16, 128>}, {pipeline_mode = #tpu.pipeline_mode<synchronous>, transform_indices = @transform_1, window_bounds = array<i64: 128, 128>}, {pipeline_mode = #tpu.pipeline_mode<synchronous>, transform_indices = @transform_2, window_bounds = array<i64: 1, 128>}, {pipeline_mode = #tpu.pipeline_mode<synchronous>, transform_indices = @transform_3, window_bounds = array<i64: 128, 128>}, {pipeline_mode = #tpu.pipeline_mode<synchronous>, transform_indices = @transform_4, window_bounds = array<i64: 1, 128>}, {transform_indices = @transform_5, window_bounds = array<i64: 16, 128>}, {transform_indices = @transform_6, window_bounds = array<i64: 16, 128>}]} {
    %c0 = arith.constant 0 : index
    %c0_0 = arith.constant 0 : index
    %0 = vector.load %arg1[%c0, %c0_0] : memref<16x128xbf16, #tpu.memory_space<vmem>>, vector<16x128xbf16>
    %c0_1 = arith.constant 0 : index
    %c0_2 = arith.constant 0 : index
    %1 = vector.load %arg2[%c0_1, %c0_2] : memref<128x128xbf16, #tpu.memory_space<vmem>>, vector<128x128xbf16>
    %cst = arith.constant dense<0.000000e+00> : vector<16x128xf32>
    %2 = tpu.matmul %0, %1, %cst {dimension_numbers = #tpu.dot_dimension_numbers<[1], [0], [0], [1], [0, 0, 1, 1], [], []>} : vector<16x128xbf16>, vector<128x128xbf16>, vector<16x128xf32> -> vector<16x128xf32>
    %c0_3 = arith.constant 0 : index
    %c0_4 = arith.constant 0 : index
    %3 = vector.load %arg3[%c0_3, %c0_4] : memref<1x128xf32, #tpu.memory_space<vmem>>, vector<1x128xf32>
    %4 = vector.broadcast %3 : vector<1x128xf32> to vector<16x128xf32>
    %5 = arith.addf %2, %4 : vector<16x128xf32>
    %c0_5 = arith.constant 0 : index
    %c0_6 = arith.constant 0 : index
    %6 = vector.load %arg4[%c0_5, %c0_6] : memref<128x128xbf16, #tpu.memory_space<vmem>>, vector<128x128xbf16>
    %cst_7 = arith.constant dense<0.000000e+00> : vector<16x128xf32>
    %7 = tpu.matmul %0, %6, %cst_7 {dimension_numbers = #tpu.dot_dimension_numbers<[1], [0], [0], [1], [0, 0, 1, 1], [], []>} : vector<16x128xbf16>, vector<128x128xbf16>, vector<16x128xf32> -> vector<16x128xf32>
    %c0_8 = arith.constant 0 : index
    %c0_9 = arith.constant 0 : index
    %8 = vector.load %arg5[%c0_8, %c0_9] : memref<1x128xf32, #tpu.memory_space<vmem>>, vector<1x128xf32>
    %9 = vector.broadcast %8 : vector<1x128xf32> to vector<16x128xf32>
    %10 = arith.addf %7, %9 : vector<16x128xf32>
    %11 = arith.truncf %5 : vector<16x128xf32> to vector<16x128xbf16>
    %c0_10 = arith.constant 0 : index
    %c0_11 = arith.constant 0 : index
    %12 = vector.load %arg6[%c0_10, %c0_11] : memref<16x128xbf16, #tpu.memory_space<vmem>>, vector<16x128xbf16>
    tpu.vector_store %arg6[%c0_10, %c0_11], %11 {strides = array<i32>} : memref<16x128xbf16, #tpu.memory_space<vmem>>, vector<16x128xbf16>,
    %13 = arith.truncf %10 : vector<16x128xf32> to vector<16x128xbf16>
    %c0_12 = arith.constant 0 : index
    %c0_13 = arith.constant 0 : index
    %14 = vector.load %arg7[%c0_12, %c0_13] : memref<16x128xbf16, #tpu.memory_space<vmem>>, vector<16x128xbf16>
    tpu.vector_store %arg7[%c0_12, %c0_13], %13 {strides = array<i32>} : memref<16x128xbf16, #tpu.memory_space<vmem>>, vector<16x128xbf16>,
    return
  }
  func.func @transform_0(%arg0: i32) -> (i32, i32) {
    %c0_i32 = arith.constant 0 : i32
    %c0_i32_0 = arith.constant 0 : i32
    return %arg0, %c0_i32 : i32, i32
  }
  func.func @transform_1(%arg0: i32) -> (i32, i32) {
    %c0_i32 = arith.constant 0 : i32
    %c0_i32_0 = arith.constant 0 : i32
    %c0_i32_1 = arith.constant 0 : i32
    return %c0_i32, %c0_i32_0 : i32, i32
  }
  func.func @transform_2(%arg0: i32) -> (i32, i32) {
    %c0_i32 = arith.constant 0 : i32
    %c0_i32_0 = arith.constant 0 : i32
    %c0_i32_1 = arith.constant 0 : i32
    return %c0_i32, %c0_i32_0 : i32, i32
  }
  func.func @transform_3(%arg0: i32) -> (i32, i32) {
    %c0_i32 = arith.constant 0 : i32
    %c0_i32_0 = arith.constant 0 : i32
    %c0_i32_1 = arith.constant 0 : i32
    return %c0_i32, %c0_i32_0 : i32, i32
  }
  func.func @transform_4(%arg0: i32) -> (i32, i32) {
    %c0_i32 = arith.constant 0 : i32
    %c0_i32_0 = arith.constant 0 : i32
    %c0_i32_1 = arith.constant 0 : i32
    return %c0_i32, %c0_i32_0 : i32, i32
  }
  func.func @transform_5(%arg0: i32) -> (i32, i32) {
    %c0_i32 = arith.constant 0 : i32
    %c0_i32_0 = arith.constant 0 : i32
    return %arg0, %c0_i32 : i32, i32
  }
  func.func @transform_6(%arg0: i32) -> (i32, i32) {
    %c0_i32 = arith.constant 0 : i32
    %c0_i32_0 = arith.constant 0 : i32
    return %arg0, %c0_i32 : i32, i32
  }
}

</mosaic_0001>

<llo_original>
// kernel: tpu_custom_call.1
$region0: #{tpu_custom_call.1}
  #allocation0 [shape = 'u32[]', space=smem, size = 0x4, offset = 0x4, fixed_abs, tag = 'smem constant byte address 0x4 - core index']
  #allocation1 [shape = 'u32[144,128]{1,0:T(1,128)}', space=vmem, size = 0x12000, scoped, tag = 'internal scratch']
  %s0 = inlined_call_operand.hbm [shape: bf16[16,128], index: 0, kind: input, shape index: {}]
  %s1 = inlined_call_operand.hbm [shape: bf16[128,128], index: 1, kind: input, shape index: {}]
  %s2 = inlined_call_operand.vmem [shape: f32[1,128], index: 2, kind: input, shape index: {}]
  %s3 = inlined_call_operand.hbm [shape: bf16[128,128], index: 3, kind: input, shape index: {}]
  %s4 = inlined_call_operand.vmem [shape: f32[1,128], index: 4, kind: input, shape index: {}]
  %s5 = inlined_call_operand.hbm [shape: bf16[16,128], index: 5, kind: output, shape index: {0}]
  %s6 = inlined_call_operand.hbm [shape: bf16[16,128], index: 6, kind: output, shape index: {1}]
  %7 = xla_tuple %s5, %s6
  %s8 = sld [smem:[#allocation0]]
  $region50: #{tpu_custom_call.1} parent=0
    _
  %s10 = ssub.s32 1, %s8
  %s11 = scalar_select 0, %s10, %s8
  $region1: #{tpu_custom_call.1} parent=0
    #allocation2 [shape = 'u8[4096]{0}', space=vmem, size = 0x1000, scoped, tag = 'input window, operand 0, single buffered']
    #allocation3 [shape = 's32[1]{0}', space=sflag, size = 0x4, scoped, tag = 'scoped memory for tpu_custom_call.1']
    #allocation4 [shape = 's32[1]{0}', space=sflag, size = 0x4, scoped, tag = 'scoped memory for tpu_custom_call.1']
    #allocation5 [shape = 'u8[32768]{0}', space=vmem, size = 0x8000, scoped, tag = 'input window, operand 1, single buffered']
    #allocation6 [shape = 's32[1]{0}', space=sflag, size = 0x4, scoped, tag = 'scoped memory for tpu_custom_call.1']
    #allocation7 [shape = 'u8[32768]{0}', space=vmem, size = 0x8000, scoped, tag = 'input window, operand 3, single buffered']
    #allocation8 [shape = 'u8[4096]{0}', space=vmem, size = 0x1000, scoped, tag = 'output window, operand 0, single buffered']
    #allocation9 [shape = 'u8[4096]{0}', space=vmem, size = 0x1000, scoped, tag = 'output window, operand 1, single buffered']
    #allocation10 [shape = 's32[1]{0}', space=sflag, size = 0x4, scoped, tag = 'scoped memory for tpu_custom_call.1']
    %12 = vsyncpa [#allocation3], 0
    %13 = vsyncpa [#allocation6], 0
    %14 = vsyncpa [#allocation4], 0
    %15 = vsyncpa [#allocation10], 0
    // Predicated region
    $region2: #{tpu_custom_call.1} parent=1 // pred_check
      _
    $region3: #{tpu_custom_call.1} parent=1 // pred_check_branch
      %17 = sbr.rel (0) target = $region5
    $region4: #{tpu_custom_call.1} parent=1 // pred_region
      %s19 = ssub.s32 128, 128
      %20 = vsyncadd [#allocation3], %s19
      %s21 = sshll.u32 [#allocation2], 4
      %s22 = int_to_ptr.vmem [resolvable:$true] %s21
      %27 = dma.hbm_to_vmem [thread:$0]  %s0, 128, %s22, [#allocation3], 64, 64, 4
    $region5: #{tpu_custom_call.1} parent=1 // pred_fallthru
      _
    // Predicated region
    $region6: #{tpu_custom_call.1} parent=1 // pred_check
      _
    $region7: #{tpu_custom_call.1} parent=1 // pred_check_branch
      %29 = sbr.rel (0) target = $region9
    $region8: #{tpu_custom_call.1} parent=1 // pred_region
      %s31 = ssub.s32 1024, 1024
      %32 = vsyncadd [#allocation6], %s31
      %s33 = sshll.u32 [#allocation5], 4
      %s34 = int_to_ptr.vmem [resolvable:$true] %s33
      %39 = dma.hbm_to_vmem [thread:$0]  %s1, 1024, %s34, [#allocation6], 64, 64, 4
    $region9: #{tpu_custom_call.1} parent=1 // pred_fallthru
      _
    // Predicated region
    $region10: #{tpu_custom_call.1} parent=1 // pred_check
      _
    $region11: #{tpu_custom_call.1} parent=1 // pred_check_branch
      %41 = sbr.rel (0) target = $region13
    $region12: #{tpu_custom_call.1} parent=1 // pred_region
      _
    $region13: #{tpu_custom_call.1} parent=1 // pred_fallthru
      _
    // Predicated region
    $region14: #{tpu_custom_call.1} parent=1 // pred_check
      _
    $region15: #{tpu_custom_call.1} parent=1 // pred_check_branch
      %43 = sbr.rel (0) target = $region17
    $region16: #{tpu_custom_call.1} parent=1 // pred_region
      %s45 = ssub.s32 1024, 1024
      %46 = vsyncadd [#allocation6], %s45
      %s47 = sshll.u32 [#allocation7], 4
      %s48 = int_to_ptr.vmem [resolvable:$true] %s47
      %53 = dma.hbm_to_vmem [thread:$0]  %s3, 1024, %s48, [#allocation6], 64, 64, 4
    $region17: #{tpu_custom_call.1} parent=1 // pred_fallthru
      _
    // Predicated region
    $region18: #{tpu_custom_call.1} parent=1 // pred_check
      _
    $region19: #{tpu_custom_call.1} parent=1 // pred_check_branch
      %55 = sbr.rel (0) target = $region21
    $region20: #{tpu_custom_call.1} parent=1 // pred_region
      _
    $region21: #{tpu_custom_call.1} parent=1 // pred_fallthru
      _
    // Predicated region
    $region22: #{tpu_custom_call.1} parent=1 // pred_check
      _
    $region23: #{tpu_custom_call.1} parent=1 // pred_check_branch
      %57 = sbr.rel (0) target = $region25
    $region24: #{tpu_custom_call.1} parent=1 // pred_region
      %58 = dma.done [#allocation3], 128
    $region25: #{tpu_custom_call.1} parent=1 // pred_fallthru
      _
    // Predicated region
    $region26: #{tpu_custom_call.1} parent=1 // pred_check
      _
    $region27: #{tpu_custom_call.1} parent=1 // pred_check_branch
      %60 = sbr.rel (0) target = $region29
    $region28: #{tpu_custom_call.1} parent=1 // pred_region
      %61 = dma.done [#allocation6], 1024
    $region29: #{tpu_custom_call.1} parent=1 // pred_fallthru
      _
    // Predicated region
    $region30: #{tpu_custom_call.1} parent=1 // pred_check
      _
    $region31: #{tpu_custom_call.1} parent=1 // pred_check_branch
      %63 = sbr.rel (0) target = $region33
    $region32: #{tpu_custom_call.1} parent=1 // pred_region
      %64 = dma.done [#allocation6], 1024
    $region33: #{tpu_custom_call.1} parent=1 // pred_fallthru
      _
    %v66 = vld [vmem:[#allocation2] sm:$0xf]
    %v67 = vld [vmem:[#allocation2 + $0x4] sm:$0xf]
    %v68 = vld [vmem:[#allocation5] sm:$0xf]
    %v69 = vld [vmem:[#allocation5 + $0x4] sm:$0xf]
    %v70 = vld [vmem:[#allocation5 + $0x8] sm:$0xf]
    %v71 = vld [vmem:[#allocation5 + $0xc] sm:$0xf]
    %v72 = vld [vmem:[#allocation5 + $0x10] sm:$0xf]
    %v73 = vld [vmem:[#allocation5 + $0x14] sm:$0xf]
    %v74 = vld [vmem:[#allocation5 + $0x18] sm:$0xf]
    %v75 = vld [vmem:[#allocation5 + $0x1c] sm:$0xf]
    %v76 = vld [vmem:[#allocation5 + $0x20] sm:$0xf]
    %v77 = vld [vmem:[#allocation5 + $0x24] sm:$0xf]
    %v78 = vld [vmem:[#allocation5 + $0x28] sm:$0xf]
    %v79 = vld [vmem:[#allocation5 + $0x2c] sm:$0xf]
    %v80 = vld [vmem:[#allocation5 + $0x30] sm:$0xf]
    %v81 = vld [vmem:[#allocation5 + $0x34] sm:$0xf]
    %v82 = vld [vmem:[#allocation5 + $0x38] sm:$0xf]
    %v83 = vld [vmem:[#allocation5 + $0x3c] sm:$0xf]
    %v84 = vld [vmem:[%s2] sm:$0x1]
    %v86 = vlaneseq
    %v87 = vshrl.u32 %v86, 7
    %v88 = vsub.s32 0, %v87
    %v89 = vrot.slane %v84, %v88
    %v93 = vunpack.c.l.b16 %v66
    %v94 = vunpack.c.l.b16 %v67
    %v95 = vpack.c.b16 %v94, %v93
    %v113 = vunpack.c.l.b16 %v68
    %v114 = vunpack.c.l.b16 %v69
    %v115 = vunpack.c.l.b16 %v70
    %v116 = vunpack.c.l.b16 %v71
    %v117 = vunpack.c.l.b16 %v72
    %v118 = vunpack.c.l.b16 %v73
    %v119 = vunpack.c.l.b16 %v74
    %v120 = vunpack.c.l.b16 %v75
    %v121 = vunpack.c.l.b16 %v76
    %v122 = vunpack.c.l.b16 %v77
    %v123 = vunpack.c.l.b16 %v78
    %v124 = vunpack.c.l.b16 %v79
    %v125 = vunpack.c.l.b16 %v80
    %v126 = vunpack.c.l.b16 %v81
    %v127 = vunpack.c.l.b16 %v82
    %v128 = vunpack.c.l.b16 %v83
    %v129 = vpack.c.b16 %v114, %v113
    %v130 = vpack.c.b16 %v116, %v115
    %v131 = vpack.c.b16 %v118, %v117
    %v132 = vpack.c.b16 %v120, %v119
    %v133 = vpack.c.b16 %v122, %v121
    %v134 = vpack.c.b16 %v124, %v123
    %v135 = vpack.c.b16 %v126, %v125
    %v136 = vpack.c.b16 %v128, %v127
    %145 = vmatprep.subr.bf16.mxu0 0
    %146 = vmatpush1.bf16.msra.mxu0 %v136
    %147 = vmatprep.subr.bf16.mxu0 0
    %148 = vmatpush1.bf16.msra.mxu0 %v135
    %149 = vmatprep.subr.bf16.mxu0 0
    %150 = vmatpush1.bf16.msra.mxu0 %v134
    %151 = vmatprep.subr.bf16.mxu0 0
    %152 = vmatpush1.bf16.msra.mxu0 %v133
    %153 = vmatprep.subr.bf16.mxu0 0
    %154 = vmatpush1.bf16.msra.mxu0 %v132
    %155 = vmatprep.subr.bf16.mxu0 0
    %156 = vmatpush1.bf16.msra.mxu0 %v131
    %157 = vmatprep.subr.bf16.mxu0 0
    %158 = vmatpush1.bf16.msra.mxu0 %v130
    %159 = vmatprep.subr.bf16.mxu0 0
    %160 = vmatpush1.bf16.msra.mxu0 %v129
    %161 = vmatprep.subr.bf16.mxu0 0
    %162 = vmatpush2.bf16.msra.mxu0 0
    %163 = vmatprep.subr.bf16.mxu0 0
    %164 = vmatpush2.bf16.msra.mxu0 0
    %165 = vmatprep.subr.bf16.mxu0 0
    %166 = vmatpush2.bf16.msra.mxu0 0
    %167 = vmatprep.subr.bf16.mxu0 0
    %168 = vmatpush2.bf16.msra.mxu0 0
    %169 = vmatprep.subr.bf16.mxu0 0
    %170 = vmatpush2.bf16.msra.mxu0 0
    %171 = vmatprep.subr.bf16.mxu0 0
    %172 = vmatpush2.bf16.msra.mxu0 0
    %173 = vmatprep.subr.bf16.mxu0 0
    %174 = vmatpush2.bf16.msra.mxu0 0
    %175 = vmatprep.subr.bf16.mxu0 0
    %176 = vmatpush2.bf16.msra.mxu0 0
    %177 = vmatprep.mubr.bf16.mxu0 0
    %178 = vmatmul.mubr.bf16.gmra.mxu0 %v95
    %v179 = vpop.f32.mrf.mxu0
    %v180 = vadd.f32 %v89, %v179
    %v181 = vpop.f32.mrf.mxu0
    %v182 = vpop.f32.mrf.mxu0
    %v183 = vadd.f32 %v89, %v182
    %v184 = vpop.f32.mrf.mxu0
    %185 = vdwg.mxu0
    %v186 = vld [vmem:[#allocation7] sm:$0xf]
    %v187 = vld [vmem:[#allocation7 + $0x4] sm:$0xf]
    %v188 = vld [vmem:[#allocation7 + $0x8] sm:$0xf]
    %v189 = vld [vmem:[#allocation7 + $0xc] sm:$0xf]
    %v190 = vld [vmem:[#allocation7 + $0x10] sm:$0xf]
    %v191 = vld [vmem:[#allocation7 + $0x14] sm:$0xf]
    %v192 = vld [vmem:[#allocation7 + $0x18] sm:$0xf]
    %v193 = vld [vmem:[#allocation7 + $0x1c] sm:$0xf]
    %v194 = vld [vmem:[#allocation7 + $0x20] sm:$0xf]
    %v195 = vld [vmem:[#allocation7 + $0x24] sm:$0xf]
    %v196 = vld [vmem:[#allocation7 + $0x28] sm:$0xf]
    %v197 = vld [vmem:[#allocation7 + $0x2c] sm:$0xf]
    %v198 = vld [vmem:[#allocation7 + $0x30] sm:$0xf]
    %v199 = vld [vmem:[#allocation7 + $0x34] sm:$0xf]
    %v200 = vld [vmem:[#allocation7 + $0x38] sm:$0xf]
    %v201 = vld [vmem:[#allocation7 + $0x3c] sm:$0xf]
    %v202 = vld [vmem:[%s4] sm:$0x1]
    %v204 = vlaneseq
    %v205 = vshrl.u32 %v204, 7
    %v206 = vsub.s32 0, %v205
    %v207 = vrot.slane %v202, %v206
    %v225 = vunpack.c.l.b16 %v186
    %v226 = vunpack.c.l.b16 %v187
    %v227 = vunpack.c.l.b16 %v188
    %v228 = vunpack.c.l.b16 %v189
    %v229 = vunpack.c.l.b16 %v190
    %v230 = vunpack.c.l.b16 %v191
    %v231 = vunpack.c.l.b16 %v192
    %v232 = vunpack.c.l.b16 %v193
    %v233 = vunpack.c.l.b16 %v194
    %v234 = vunpack.c.l.b16 %v195
    %v235 = vunpack.c.l.b16 %v196
    %v236 = vunpack.c.l.b16 %v197
    %v237 = vunpack.c.l.b16 %v198
    %v238 = vunpack.c.l.b16 %v199
    %v239 = vunpack.c.l.b16 %v200
    %v240 = vunpack.c.l.b16 %v201
    %v241 = vpack.c.b16 %v226, %v225
    %v242 = vpack.c.b16 %v228, %v227
    %v243 = vpack.c.b16 %v230, %v229
    %v244 = vpack.c.b16 %v232, %v231
    %v245 = vpack.c.b16 %v234, %v233
    %v246 = vpack.c.b16 %v236, %v235
    %v247 = vpack.c.b16 %v238, %v237
    %v248 = vpack.c.b16 %v240, %v239
    %257 = vmatprep.subr.bf16.mxu0 0
    %258 = vmatpush1.bf16.msra.mxu0 %v248
    %259 = vmatprep.subr.bf16.mxu0 0
    %260 = vmatpush1.bf16.msra.mxu0 %v247
    %261 = vmatprep.subr.bf16.mxu0 0
    %262 = vmatpush1.bf16.msra.mxu0 %v246
    %263 = vmatprep.subr.bf16.mxu0 0
    %264 = vmatpush1.bf16.msra.mxu0 %v245
    %265 = vmatprep.subr.bf16.mxu0 0
    %266 = vmatpush1.bf16.msra.mxu0 %v244
    %267 = vmatprep.subr.bf16.mxu0 0
    %268 = vmatpush1.bf16.msra.mxu0 %v243
    %269 = vmatprep.subr.bf16.mxu0 0
    %270 = vmatpush1.bf16.msra.mxu0 %v242
    %271 = vmatprep.subr.bf16.mxu0 0
    %272 = vmatpush1.bf16.msra.mxu0 %v241
    %273 = vmatprep.subr.bf16.mxu0 0
    %274 = vmatpush2.bf16.msra.mxu0 0
    %275 = vmatprep.subr.bf16.mxu0 0
    %276 = vmatpush2.bf16.msra.mxu0 0
    %277 = vmatprep.subr.bf16.mxu0 0
    %278 = vmatpush2.bf16.msra.mxu0 0
    %279 = vmatprep.subr.bf16.mxu0 0
    %280 = vmatpush2.bf16.msra.mxu0 0
    %281 = vmatprep.subr.bf16.mxu0 0
    %282 = vmatpush2.bf16.msra.mxu0 0
    %283 = vmatprep.subr.bf16.mxu0 0
    %284 = vmatpush2.bf16.msra.mxu0 0
    %285 = vmatprep.subr.bf16.mxu0 0
    %286 = vmatpush2.bf16.msra.mxu0 0
    %287 = vmatprep.subr.bf16.mxu0 0
    %288 = vmatpush2.bf16.msra.mxu0 0
    %289 = vmatprep.mubr.bf16.mxu0 0
    %290 = vmatmul.mubr.bf16.gmra.mxu0 %v95
    %v291 = vpop.f32.mrf.mxu0
    %v292 = vadd.f32 %v207, %v291
    %v293 = vpop.f32.mrf.mxu0
    %v294 = vpop.f32.mrf.mxu0
    %v295 = vadd.f32 %v207, %v294
    %v296 = vpop.f32.mrf.mxu0
    %297 = vdwg.mxu0
    %v298 = vpack.c.bf16 %v183, %v180
    %v300 = vunpack.c.l.b16 %v298
    %v301 = vunpack.c.h.b16 %v298
    %v302 = vpack.c.b16 %v300, %v300
    %v303 = vpack.c.b16 %v301, %v301
    %306 = vst [vmem:[#allocation8] sm:$0xf] %v302
    %307 = vst [vmem:[#allocation8 + $0x4] sm:$0xf] %v303
    %v308 = vpack.c.bf16 %v295, %v292
    %v310 = vunpack.c.l.b16 %v308
    %v311 = vunpack.c.h.b16 %v308
    %v312 = vpack.c.b16 %v310, %v310
    %v313 = vpack.c.b16 %v311, %v311
    %316 = vst [vmem:[#allocation9] sm:$0xf] %v312
    %317 = vst [vmem:[#allocation9 + $0x4] sm:$0xf] %v313
    // Predicated region
    $region34: #{tpu_custom_call.1} parent=1 // pred_check
      _
    $region35: #{tpu_custom_call.1} parent=1 // pred_check_branch
      %319 = sbr.rel (0) target = $region37
    $region36: #{tpu_custom_call.1} parent=1 // pred_region
      %s321 = ssub.s32 128, 128
      %322 = vsyncadd [#allocation4], %s321
      %s323 = sshll.u32 [#allocation8], 4
      %s324 = int_to_ptr.vmem [resolvable:$true] %s323
      %329 = dma.vmem_to_hbm [thread:$0]  %s324, 128, %s5, [#allocation4], 64, 64, 4
    $region37: #{tpu_custom_call.1} parent=1 // pred_fallthru
      _
    // Predicated region
    $region38: #{tpu_custom_call.1} parent=1 // pred_check
      _
    $region39: #{tpu_custom_call.1} parent=1 // pred_check_branch
      %331 = sbr.rel (0) target = $region41
    $region40: #{tpu_custom_call.1} parent=1 // pred_region
      %s333 = ssub.s32 128, 128
      %334 = vsyncadd [#allocation10], %s333
      %s335 = sshll.u32 [#allocation9], 4
      %s336 = int_to_ptr.vmem [resolvable:$true] %s335
      %341 = dma.vmem_to_hbm [thread:$0]  %s336, 128, %s6, [#allocation10], 64, 64, 4
    $region41: #{tpu_custom_call.1} parent=1 // pred_fallthru
      _
    // Predicated region
    $region42: #{tpu_custom_call.1} parent=1 // pred_check
      _
    $region43: #{tpu_custom_call.1} parent=1 // pred_check_branch
      %343 = sbr.rel (0) target = $region45
    $region44: #{tpu_custom_call.1} parent=1 // pred_region
      %344 = dma.done [#allocation4], 128
    $region45: #{tpu_custom_call.1} parent=1 // pred_fallthru
      _
    // Predicated region
    $region46: #{tpu_custom_call.1} parent=1 // pred_check
      _
    $region47: #{tpu_custom_call.1} parent=1 // pred_check_branch
      %346 = sbr.rel (0) target = $region49
    $region48: #{tpu_custom_call.1} parent=1 // pred_region
      %347 = dma.done [#allocation10], 128
    $region49: #{tpu_custom_call.1} parent=1 // pred_fallthru
      _
    %348 = vsyncpa [#allocation3], 1
    %349 = vsyncpa [#allocation6], 1
    %350 = vsyncpa [#allocation4], 1
    %351 = vsyncpa [#allocation10], 1

</llo_original>
